<compile_context>
chip_gen: v7x
topology: tpu7x:2x2x1
jax: 0.10.0
libtpu: 0.0.40
codegen_flags: <defaults>
</compile_context>

<pallas_src>
import functools

import jax
import jax.numpy as jnp
from jax.experimental import pallas as pl
from jax.experimental.pallas import tpu as pltpu

U_MAX = 4.0
HIDDEN = 32          # both hidden layers are width 32 (hidden_dims=[32, 32])
TM_MAX = 16384       # max samples (lanes) per grid step (safe on v5e/v6e/v7x VMEM)


def _round_up(x, m):
    return ((x + m - 1) // m) * m


def _mlp_flux_kernel(u_ref, w1_ref, b1_ref, w2_ref, b2_ref, w3_ref, b3_ref,
                     o_ref, *, use_bf16):
    """One (2, TM) tile of samples; activations are (32, TM), features on sublanes."""
    uL = u_ref[0:1, :]                     # (1, TM)  samples on lanes
    uR = u_ref[1:2, :]                     # (1, TM)

    # layer 1 (2 -> 32): VPU broadcast outer-product (no MXU, all f32)
    w1 = w1_ref[...]                       # (32, 2)  [out, in]
    h = w1[:, 0:1] * uL + w1[:, 1:2] * uR + b1_ref[...]        # (32, TM)
    h = jnp.maximum(h, 0.0)

    # layer 2 (32 -> 32): the only MXU matmul.  bf16 operands halve the vmatmul
    # push count (and avoid a multi-pass f32 MXU stream); accumulate in f32.
    if use_bf16:
        h2 = jnp.dot(w2_ref[...], h.astype(jnp.bfloat16),
                     preferred_element_type=jnp.float32)        # w2 already bf16
    else:
        h2 = jnp.dot(w2_ref[...], h, preferred_element_type=jnp.float32)
    h2 = jnp.maximum(h2 + b2_ref[...], 0.0)                     # (32, TM), f32

    # layer 3 (32 -> 1): 3 free static 8-sublane vreg adds + one intra-vreg reduce
    p = w3_ref[...] * h2                                        # (32, TM)
    y8 = p[0:8, :] + p[8:16, :] + p[16:24, :] + p[24:32, :]     # (8, TM)
    y = jnp.sum(y8, axis=0, keepdims=True) + b3_ref[...]        # (1, TM)

    # output squash on the single real row: 0.5*(u_max+1)*(tanh(y/u_max)+1) - 0.5
    o_ref[...] = 0.5 * (U_MAX + 1.0) * (jnp.tanh(y * (1.0 / U_MAX)) + 1.0) - 0.5


@functools.partial(jax.jit, static_argnames=("tm", "use_bf16"))
def mlp_flux_2_value_forward(uL, uR, params, *, tm=None, use_bf16=True):
    """Pallas forward. uL, uR: (B, N) float32 -> (B, N) float32."""
    B, N = uL.shape
    M = B * N
    if tm is None:
        # >= 2 grid steps whenever M > 128 so v7x can shard tiles across both TCs
        tm = min(TM_MAX, max(128, _round_up(pl.cdiv(M, 2), 128)))
    assert tm % 128 == 0, "tile width must be a multiple of 128 lanes"
    M_pad = _round_up(M, tm)
    grid_m = M_pad // tm

    # samples-on-lanes layout: one packed (2, M) slab (row 0 = uL, row 1 = uR);
    # zero-pad lanes only if M is ragged w.r.t. the tile.
    u = jnp.stack([uL.reshape(M), uR.reshape(M)], axis=0).astype(jnp.float32)
    if M_pad != M:
        u = jnp.pad(u, ((0, 0), (0, M_pad - M)))

    w1, b1, w2, b2, w3t, b3 = params
    w2_in = w2.astype(jnp.bfloat16) if use_bf16 else w2.astype(jnp.float32)

    def const_spec(shape):                 # whole small array, VMEM-resident
        return pl.BlockSpec(shape, lambda i: (0, 0))

    out = pl.pallas_call(
        functools.partial(_mlp_flux_kernel, use_bf16=use_bf16),
        out_shape=jax.ShapeDtypeStruct((1, M_pad), jnp.float32),
        grid=(grid_m,),
        in_specs=[
            pl.BlockSpec((2, tm), lambda i: (0, i)),   # packed [uL; uR] tile
            const_spec((HIDDEN, 2)),                   # w1  (out, in)
            const_spec((HIDDEN, 1)),                   # b1
            const_spec((HIDDEN, HIDDEN)),              # w2  (out, in), bf16 or f32
            const_spec((HIDDEN, 1)),                   # b2
            const_spec((HIDDEN, 1)),                   # w3^T
            const_spec((1, 1)),                        # b3
        ],
        out_specs=pl.BlockSpec((1, tm), lambda i: (0, i)),
        compiler_params=pltpu.CompilerParams(
            dimension_semantics=("parallel",)),        # megacore sharding on v7x
    )(u, w1, b1, w2_in, b2, w3t, b3)

    return out[0, :M].reshape(B, N)


def init_params(key):
    """Xavier-uniform weights (torch convention, (out, in)), zero biases."""
    k1, k2, k3 = jax.random.split(key, 3)

    def xavier(k, out_d, in_d):
        bound = (6.0 / (in_d + out_d)) ** 0.5
        return jax.random.uniform(k, (out_d, in_d), jnp.float32,
                                  minval=-bound, maxval=bound)

    w1 = xavier(k1, HIDDEN, 2)                     # (32, 2)
    b1 = jnp.zeros((HIDDEN, 1), jnp.float32)
    w2 = xavier(k2, HIDDEN, HIDDEN)                # (32, 32)
    b2 = jnp.zeros((HIDDEN, 1), jnp.float32)
    w3t = xavier(k3, 1, HIDDEN).T                  # stored transposed: (32, 1)
    b3 = jnp.zeros((1, 1), jnp.float32)
    return (w1, b1, w2, b2, w3t, b3)


def _reference_forward(uL, uR, params):
    """Pure-JAX reference (torch-layout math, full f32) for the correctness check."""
    B, N = uL.shape
    w1, b1, w2, b2, w3t, b3 = params
    hp = jax.lax.Precision.HIGHEST
    x = jnp.stack([uL, uR], axis=-1).reshape(B * N, 2).astype(jnp.float32)
    h = jnp.maximum(jnp.dot(x, w1.T, precision=hp) + b1[:, 0], 0.0)
    h = jnp.maximum(jnp.dot(h, w2.T, precision=hp) + b2[:, 0], 0.0)
    y = jnp.dot(h, w3t, precision=hp) + b3[0, 0]
    y = 0.5 * (U_MAX + 1.0) * (jnp.tanh(y / U_MAX) + 1.0) - 0.5
    return y.reshape(B, N)


if __name__ == "__main__":
    key = jax.random.PRNGKey(0)
    kp, kb1, kb2, kb3, kl, kr = jax.random.split(key, 6)

    w1, _, w2, _, w3t, _ = init_params(kp)
    # non-zero biases so the bias path is actually exercised by the check
    b1 = 0.1 * jax.random.normal(kb1, (HIDDEN, 1), jnp.float32)
    b2 = 0.1 * jax.random.normal(kb2, (HIDDEN, 1), jnp.float32)
    b3 = 0.1 * jax.random.normal(kb3, (1, 1), jnp.float32)
    params = (w1, b1, w2, b2, w3t, b3)

    # shape 1: tiny (B, N), M not a multiple of 128 -> exercises the pad path
    B, N = 2, 8
    uL = jax.random.uniform(kl, (B, N), jnp.float32) * 2.0
    uR = jax.random.uniform(kr, (B, N), jnp.float32) * 2.0
    ref = _reference_forward(uL, uR, params)

    # exact-f32 path: tight tolerance (structural correctness)
    out_f32 = jax.block_until_ready(
        mlp_flux_2_value_forward(uL, uR, params, use_bf16=False))
    assert out_f32.shape == (B, N)
    assert jnp.allclose(out_f32, ref, atol=1e-5, rtol=1e-4), "f32 mismatch (2, 8)"

    # bf16-matmul fast path (default): looser tolerance per bf16 rounding
    out_bf16 = jax.block_until_ready(mlp_flux_2_value_forward(uL, uR, params))
    assert out_bf16.shape == (B, N)
    assert jnp.allclose(out_bf16, ref, atol=2e-2, rtol=2e-2), "bf16 mismatch (2, 8)"

    # shape 2: M = 1024 -> auto tile picks tm=512 (2 grid steps, both v7x TCs busy)
    B2, N2 = 4, 256
    uL2 = jax.random.uniform(kl, (B2, N2), jnp.float32) * 2.0
    uR2 = jax.random.uniform(kr, (B2, N2), jnp.float32) * 2.0
    ref2 = _reference_forward(uL2, uR2, params)

    out2 = jax.block_until_ready(mlp_flux_2_value_forward(uL2, uR2, params))
    assert out2.shape == (B2, N2)
    assert jnp.allclose(out2, ref2, atol=2e-2, rtol=2e-2), "bf16 mismatch (4, 256)"

    # forced small tile -> multi-step grid (8 steps), resident weights, pipelining
    out3 = jax.block_until_ready(
        mlp_flux_2_value_forward(uL2, uR2, params, tm=128, use_bf16=False))
    assert jnp.allclose(out3, ref2, atol=1e-5, rtol=1e-4), "f32 mismatch (4, 256, tm=128)"

    print("KERNEL_OK")
</pallas_src>

<mosaic_0001>
module attributes {stable_mosaic.version = 11 : i64} {
  func.func @_mlp_flux_kernel(%arg0: i32, %arg1: memref<2x128xf32, #tpu.memory_space<vmem>>, %arg2: memref<32x2xf32, #tpu.memory_space<vmem>>, %arg3: memref<32x1xf32, #tpu.memory_space<vmem>>, %arg4: memref<32x32xf32, #tpu.memory_space<vmem>>, %arg5: memref<32x1xf32, #tpu.memory_space<vmem>>, %arg6: memref<32x1xf32, #tpu.memory_space<vmem>>, %arg7: memref<1x1xf32, #tpu.memory_space<vmem>>, %arg8: memref<1x128xf32, #tpu.memory_space<vmem>>) attributes {dimension_semantics = [#tpu.dimension_semantics<parallel>], iteration_bounds = array<i64: 1>, scalar_prefetch = 0 : i64, scratch_operands = 0 : i64, tpu.core_type = #tpu.core_type<tc>, window_params = [{transform_indices = @transform_0, window_bounds = array<i64: 2, 128>}, {pipeline_mode = #tpu.pipeline_mode<synchronous>, transform_indices = @transform_1, window_bounds = array<i64: 32, 2>}, {pipeline_mode = #tpu.pipeline_mode<synchronous>, transform_indices = @transform_2, window_bounds = array<i64: 32, 1>}, {pipeline_mode = #tpu.pipeline_mode<synchronous>, transform_indices = @transform_3, window_bounds = array<i64: 32, 32>}, {pipeline_mode = #tpu.pipeline_mode<synchronous>, transform_indices = @transform_4, window_bounds = array<i64: 32, 1>}, {pipeline_mode = #tpu.pipeline_mode<synchronous>, transform_indices = @transform_5, window_bounds = array<i64: 32, 1>}, {pipeline_mode = #tpu.pipeline_mode<synchronous>, transform_indices = @transform_6, window_bounds = array<i64: 1, 1>}, {transform_indices = @transform_7, window_bounds = array<i64: 1, 128>}]} {
    %c0 = arith.constant 0 : index
    %c0_0 = arith.constant 0 : index
    %0 = vector.load %arg1[%c0, %c0_0] : memref<2x128xf32, #tpu.memory_space<vmem>>, vector<1x128xf32>
    %c1 = arith.constant 1 : index
    %c0_1 = arith.constant 0 : index
    %1 = vector.load %arg1[%c1, %c0_1] : memref<2x128xf32, #tpu.memory_space<vmem>>, vector<1x128xf32>
    %c0_2 = arith.constant 0 : index
    %c0_3 = arith.constant 0 : index
    %2 = vector.load %arg2[%c0_2, %c0_3] : memref<32x2xf32, #tpu.memory_space<vmem>>, vector<32x2xf32>
    %3 = vector.extract_strided_slice %2 {offsets = [0, 0], sizes = [32, 1], strides = [1, 1]} : vector<32x2xf32> to vector<32x1xf32>
    %4 = vector.broadcast %3 : vector<32x1xf32> to vector<32x128xf32>
    %5 = vector.broadcast %0 : vector<1x128xf32> to vector<32x128xf32>
    %6 = arith.mulf %4, %5 : vector<32x128xf32>
    %7 = vector.extract_strided_slice %2 {offsets = [0, 1], sizes = [32, 1], strides = [1, 1]} : vector<32x2xf32> to vector<32x1xf32>
    %8 = vector.broadcast %7 : vector<32x1xf32> to vector<32x128xf32>
    %9 = vector.broadcast %1 : vector<1x128xf32> to vector<32x128xf32>
    %10 = arith.mulf %8, %9 : vector<32x128xf32>
    %11 = arith.addf %6, %10 : vector<32x128xf32>
    %c0_4 = arith.constant 0 : index
    %c0_5 = arith.constant 0 : index
    %12 = vector.load %arg3[%c0_4, %c0_5] : memref<32x1xf32, #tpu.memory_space<vmem>>, vector<32x1xf32>
    %13 = vector.broadcast %12 : vector<32x1xf32> to vector<32x128xf32>
    %14 = arith.addf %11, %13 : vector<32x128xf32>
    %cst = arith.constant 0.000000e+00 : f32
    %15 = vector.broadcast %cst : f32 to vector<32x128xf32>
    %16 = arith.maximumf %14, %15 : vector<32x128xf32>
    %c0_6 = arith.constant 0 : index
    %c0_7 = arith.constant 0 : index
    %17 = vector.load %arg4[%c0_6, %c0_7] : memref<32x32xf32, #tpu.memory_space<vmem>>, vector<32x32xf32>
    %cst_8 = arith.constant dense<0.000000e+00> : vector<32x128xf32>
    %18 = tpu.matmul %17, %16, %cst_8 {dimension_numbers = #tpu.dot_dimension_numbers<[1], [0], [0], [1], [0, 0, 1, 1], [], []>} : vector<32x32xf32>, vector<32x128xf32>, vector<32x128xf32> -> vector<32x128xf32>
    %c0_9 = arith.constant 0 : index
    %c0_10 = arith.constant 0 : index
    %19 = vector.load %arg5[%c0_9, %c0_10] : memref<32x1xf32, #tpu.memory_space<vmem>>, vector<32x1xf32>
    %20 = vector.broadcast %19 : vector<32x1xf32> to vector<32x128xf32>
    %21 = arith.addf %18, %20 : vector<32x128xf32>
    %cst_11 = arith.constant 0.000000e+00 : f32
    %22 = vector.broadcast %cst_11 : f32 to vector<32x128xf32>
    %23 = arith.maximumf %21, %22 : vector<32x128xf32>
    %c0_12 = arith.constant 0 : index
    %c0_13 = arith.constant 0 : index
    %24 = vector.load %arg6[%c0_12, %c0_13] : memref<32x1xf32, #tpu.memory_space<vmem>>, vector<32x1xf32>
    %25 = vector.broadcast %24 : vector<32x1xf32> to vector<32x128xf32>
    %26 = arith.mulf %25, %23 : vector<32x128xf32>
    %27 = vector.extract_strided_slice %26 {offsets = [0, 0], sizes = [8, 128], strides = [1, 1]} : vector<32x128xf32> to vector<8x128xf32>
    %28 = vector.extract_strided_slice %26 {offsets = [8, 0], sizes = [8, 128], strides = [1, 1]} : vector<32x128xf32> to vector<8x128xf32>
    %29 = arith.addf %27, %28 : vector<8x128xf32>
    %30 = vector.extract_strided_slice %26 {offsets = [16, 0], sizes = [8, 128], strides = [1, 1]} : vector<32x128xf32> to vector<8x128xf32>
    %31 = arith.addf %29, %30 : vector<8x128xf32>
    %32 = vector.extract_strided_slice %26 {offsets = [24, 0], sizes = [8, 128], strides = [1, 1]} : vector<32x128xf32> to vector<8x128xf32>
    %33 = arith.addf %31, %32 : vector<8x128xf32>
    %cst_14 = arith.constant dense<0.000000e+00> : vector<128xf32>
    %34 = vector.multi_reduction <add>, %33, %cst_14 [0] : vector<8x128xf32> to vector<128xf32>
    %35 = vector.shape_cast %34 : vector<128xf32> to vector<1x128xf32>
    %c0_15 = arith.constant 0 : index
    %c0_16 = arith.constant 0 : index
    %36 = vector.load %arg7[%c0_15, %c0_16] : memref<1x1xf32, #tpu.memory_space<vmem>>, vector<1x1xf32>
    %37 = vector.broadcast %36 : vector<1x1xf32> to vector<1x128xf32>
    %38 = arith.addf %35, %37 : vector<1x128xf32>
    %cst_17 = arith.constant 2.500000e-01 : f32
    %39 = vector.broadcast %cst_17 : f32 to vector<1x128xf32>
    %40 = arith.mulf %38, %39 : vector<1x128xf32>
    %41 = math.tanh %40 : vector<1x128xf32>
    %cst_18 = arith.constant 1.000000e+00 : f32
    %42 = vector.broadcast %cst_18 : f32 to vector<1x128xf32>
    %43 = arith.addf %41, %42 : vector<1x128xf32>
    %cst_19 = arith.constant 2.500000e+00 : f32
    %44 = vector.broadcast %cst_19 : f32 to vector<1x128xf32>
    %45 = arith.mulf %44, %43 : vector<1x128xf32>
    %cst_20 = arith.constant 5.000000e-01 : f32
    %46 = vector.broadcast %cst_20 : f32 to vector<1x128xf32>
    %47 = arith.subf %45, %46 : vector<1x128xf32>
    %c0_21 = arith.constant 0 : index
    %c0_22 = arith.constant 0 : index
    %48 = vector.load %arg8[%c0_21, %c0_22] : memref<1x128xf32, #tpu.memory_space<vmem>>, vector<1x128xf32>
    tpu.vector_store %arg8[%c0_21, %c0_22], %47 {strides = array<i32>} : memref<1x128xf32, #tpu.memory_space<vmem>>, vector<1x128xf32>,
    return
  }
  func.func @transform_0(%arg0: i32) -> (i32, i32) {
    %c0_i32 = arith.constant 0 : i32
    %c0_i32_0 = arith.constant 0 : i32
    return %c0_i32, %arg0 : i32, i32
  }
  func.func @transform_1(%arg0: i32) -> (i32, i32) {
    %c0_i32 = arith.constant 0 : i32
    %c0_i32_0 = arith.constant 0 : i32
    %c0_i32_1 = arith.constant 0 : i32
    return %c0_i32, %c0_i32_0 : i32, i32
  }
  func.func @transform_2(%arg0: i32) -> (i32, i32) {
    %c0_i32 = arith.constant 0 : i32
    %c0_i32_0 = arith.constant 0 : i32
    %c0_i32_1 = arith.constant 0 : i32
    return %c0_i32, %c0_i32_0 : i32, i32
  }
  func.func @transform_3(%arg0: i32) -> (i32, i32) {
    %c0_i32 = arith.constant 0 : i32
    %c0_i32_0 = arith.constant 0 : i32
    %c0_i32_1 = arith.constant 0 : i32
    return %c0_i32, %c0_i32_0 : i32, i32
  }
  func.func @transform_4(%arg0: i32) -> (i32, i32) {
    %c0_i32 = arith.constant 0 : i32
    %c0_i32_0 = arith.constant 0 : i32
    %c0_i32_1 = arith.constant 0 : i32
    return %c0_i32, %c0_i32_0 : i32, i32
  }
  func.func @transform_5(%arg0: i32) -> (i32, i32) {
    %c0_i32 = arith.constant 0 : i32
    %c0_i32_0 = arith.constant 0 : i32
    %c0_i32_1 = arith.constant 0 : i32
    return %c0_i32, %c0_i32_0 : i32, i32
  }
  func.func @transform_6(%arg0: i32) -> (i32, i32) {
    %c0_i32 = arith.constant 0 : i32
    %c0_i32_0 = arith.constant 0 : i32
    %c0_i32_1 = arith.constant 0 : i32
    return %c0_i32, %c0_i32_0 : i32, i32
  }
  func.func @transform_7(%arg0: i32) -> (i32, i32) {
    %c0_i32 = arith.constant 0 : i32
    %c0_i32_0 = arith.constant 0 : i32
    return %c0_i32, %arg0 : i32, i32
  }
}

</mosaic_0001>

<llo_original>
// kernel: squeeze.1
$region0: #{squeeze.1}
  %s0 = inlined_call_operand.vmem [shape: f32[16], index: 0, kind: input, shape index: {}]
  %s1 = inlined_call_operand.hbm [shape: f32[2,8], index: 1, kind: output, shape index: {}]
  $region1: #{squeeze.1} parent=0
    #allocation0 [shape = 'u8[1024]{0}', space=vmem, size = 0x400, scoped, tag = 'operand span for operand 1']
    #allocation1 [shape = 's32[1]{0}', space=sflag, size = 0x4, scoped, tag = 'scoped memory for squeeze.1']
    #allocation2 [shape = 'u8[4096]{0}', space=vmem, size = 0x1000, scoped, tag = 'scoped mem for output reshape']
    #allocation3 [shape = 'u8[4096]{0}', space=vmem, size = 0x1000, scoped, tag = 'scoped mem for input reshape']
    %2 = vsyncpa [#allocation1], 0
    %s4 = sshllo.u32 0, 1
    %v5 = vld [vmem:[%s0] sm:%s4]
    %6 = vst [vmem:[#allocation3] sm:%s4] %v5
    %v7 = vld [vmem:[#allocation3] sm:$0x1]
    %vm8 = vcmask 64512
    %9 = vst.msk [vmem:[#allocation2] sm:$0x1] %vm8, %v7
    %v10 = vld [vmem:[#allocation3] sm:$0x1]
    %11 = vrot.lane.b32.xlu0 %v10, 120
    %v12 = vpop.permute.xlu0 %11
    %vm13 = vcmask 64512
    %s14 = scalar_lea.vmem [#allocation2], 1
    %15 = vst.msk [vmem:[%s14] sm:$0x1] %vm13, %v12
    %s17 = sshllo.u32 0, 2
    %v19 = vld [vmem:[#allocation2] sm:%s17]
    %s20 = sshllo.u32 0, 2
    %21 = vst [vmem:[#allocation0] sm:%s20] %v19
    %s23 = ssub.s32 32, 32
    %24 = vsyncadd [#allocation1], %s23
    %s26 = sshll.u32 [#allocation0], 4
    %s27 = int_to_ptr.vmem [resolvable:$true] %s26
    %29 = dma.vmem_to_hbm [thread:$0]  %s27, 32, %s1, [#allocation1]
    %30 = dma.done [#allocation1], 32
    %31 = vsyncpa [#allocation1], 1

// kernel: mlp_flux_2_value_forward.1
$region0: #{mlp_flux_2_value_forward.1}
  #allocation0 [shape = 'u32[]', space=smem, size = 0x4, offset = 0x4, fixed_abs, tag = 'smem constant byte address 0x4 - core index']
  #allocation1 [shape = 'u32[144,128]{1,0:T(1,128)}', space=vmem, size = 0x12000, scoped, tag = 'internal scratch']
  #allocation2 [shape = 'f32[1,1]{1,0:T(1,128)S(1)}', space=vmem, size = 0x200, scoped, tag = 'scoped memory for mlp_flux_2_value_forward.1']
  %s0 = inlined_call_operand.vmem [shape: f32[2,128], index: 0, kind: input, shape index: {}]
  %s1 = inlined_call_operand.vmem [shape: f32[32,2], index: 1, kind: input, shape index: {}]
  %s2 = inlined_call_operand.vmem [shape: f32[32,1], index: 2, kind: input, shape index: {}]
  %s3 = inlined_call_operand.vmem [shape: f32[32,32], index: 3, kind: input, shape index: {}]
  %s4 = inlined_call_operand.vmem [shape: f32[32,1], index: 4, kind: input, shape index: {}]
  %s5 = inlined_call_operand.vmem [shape: f32[32,1], index: 5, kind: input, shape index: {}]
  %s6 = inlined_call_operand.<no memory space> [shape: f32[1,1], index: 6, kind: input, shape index: {}]
  %s7 = inlined_call_operand.vmem [shape: f32[1,128], index: 7, kind: output, shape index: {}]
  %s8 = sld [smem:[#allocation0]]
  $region38: #{mlp_flux_2_value_forward.1} parent=0
    _
  %s10 = ssub.s32 1, %s8
  %s11 = scalar_select 0, %s10, %s8
  %v12 = vstv %s6
  %13 = vst [vmem:[#allocation2] sm:$0x1] %v12
  // Predicated region
  $region2: #{mlp_flux_2_value_forward.1} parent=0 // pred_check
    _
  $region3: #{mlp_flux_2_value_forward.1} parent=0 // pred_check_branch
    %15 = sbr.rel (0) target = $region5
  $region4: #{mlp_flux_2_value_forward.1} parent=0 // pred_region
    _
  $region5: #{mlp_flux_2_value_forward.1} parent=0 // pred_fallthru
    _
  // Predicated region
  $region6: #{mlp_flux_2_value_forward.1} parent=0 // pred_check
    _
  $region7: #{mlp_flux_2_value_forward.1} parent=0 // pred_check_branch
    %17 = sbr.rel (0) target = $region9
  $region8: #{mlp_flux_2_value_forward.1} parent=0 // pred_region
    _
  $region9: #{mlp_flux_2_value_forward.1} parent=0 // pred_fallthru
    _
  // Predicated region
  $region10: #{mlp_flux_2_value_forward.1} parent=0 // pred_check
    _
  $region11: #{mlp_flux_2_value_forward.1} parent=0 // pred_check_branch
    %19 = sbr.rel (0) target = $region13
  $region12: #{mlp_flux_2_value_forward.1} parent=0 // pred_region
    _
  $region13: #{mlp_flux_2_value_forward.1} parent=0 // pred_fallthru
    _
  // Predicated region
  $region14: #{mlp_flux_2_value_forward.1} parent=0 // pred_check
    _
  $region15: #{mlp_flux_2_value_forward.1} parent=0 // pred_check_branch
    %21 = sbr.rel (0) target = $region17
  $region16: #{mlp_flux_2_value_forward.1} parent=0 // pred_region
    _
  $region17: #{mlp_flux_2_value_forward.1} parent=0 // pred_fallthru
    _
  // Predicated region
  $region18: #{mlp_flux_2_value_forward.1} parent=0 // pred_check
    _
  $region19: #{mlp_flux_2_value_forward.1} parent=0 // pred_check_branch
    %23 = sbr.rel (0) target = $region21
  $region20: #{mlp_flux_2_value_forward.1} parent=0 // pred_region
    _
  $region21: #{mlp_flux_2_value_forward.1} parent=0 // pred_fallthru
    _
  // Predicated region
  $region22: #{mlp_flux_2_value_forward.1} parent=0 // pred_check
    _
  $region23: #{mlp_flux_2_value_forward.1} parent=0 // pred_check_branch
    %25 = sbr.rel (0) target = $region25
  $region24: #{mlp_flux_2_value_forward.1} parent=0 // pred_region
    _
  $region25: #{mlp_flux_2_value_forward.1} parent=0 // pred_fallthru
    _
  // Predicated region
  $region26: #{mlp_flux_2_value_forward.1} parent=0 // pred_check
    _
  $region27: #{mlp_flux_2_value_forward.1} parent=0 // pred_check_branch
    %27 = sbr.rel (0) target = $region29
  $region28: #{mlp_flux_2_value_forward.1} parent=0 // pred_region
    _
  $region29: #{mlp_flux_2_value_forward.1} parent=0 // pred_fallthru
    _
  %v28 = vld [vmem:[%s0] sm:$0x1]
  %v29 = vld [vmem:[%s0 + $0x1] sm:$0x1]
  %v30 = vld [vmem:[%s1] sm:$0xff]
  %v31 = vld [vmem:[%s1 + $0x8] sm:$0xff]
  %v32 = vld [vmem:[%s1 + $0x10] sm:$0xff]
  %v33 = vld [vmem:[%s1 + $0x18] sm:$0xff]
  %35 = vset.pattern.permute.xlu0 0
  %36 = vperm.xlu0 %35, %v30
  %v37 = vpop.permute.xlu0 %36
  %40 = vset.pattern.permute.xlu0 0
  %41 = vperm.xlu0 %40, %v31
  %v42 = vpop.permute.xlu0 %41
  %45 = vset.pattern.permute.xlu0 0
  %46 = vperm.xlu0 %45, %v32
  %v47 = vpop.permute.xlu0 %46
  %50 = vset.pattern.permute.xlu0 0
  %51 = vperm.xlu0 %50, %v33
  %v52 = vpop.permute.xlu0 %51
  %v54 = vlaneseq
  %v55 = vshrl.u32 %v54, 7
  %v56 = vsub.s32 0, %v55
  %v57 = vrot.slane %v28, %v56
  %v58 = vmul.f32 %v37, %v57
  %v59 = vmul.f32 %v42, %v57
  %v60 = vmul.f32 %v47, %v57
  %v61 = vmul.f32 %v52, %v57
  %62 = vset.pattern.permute.xlu0 1
  %63 = vperm.xlu0 %62, %v30
  %v64 = vpop.permute.xlu0 %63
  %66 = vset.pattern.permute.xlu0 1
  %67 = vperm.xlu0 %66, %v31
  %v68 = vpop.permute.xlu0 %67
  %70 = vset.pattern.permute.xlu0 1
  %71 = vperm.xlu0 %70, %v32
  %v72 = vpop.permute.xlu0 %71
  %74 = vset.pattern.permute.xlu0 1
  %75 = vperm.xlu0 %74, %v33
  %v76 = vpop.permute.xlu0 %75
  %v78 = vlaneseq
  %v79 = vshrl.u32 %v78, 7
  %v80 = vsub.s32 0, %v79
  %v81 = vrot.slane %v29, %v80
  %v82 = vmul.f32 %v64, %v81
  %v83 = vmul.f32 %v68, %v81
  %v84 = vmul.f32 %v72, %v81
  %v85 = vmul.f32 %v76, %v81
  %v86 = vadd.f32 %v58, %v82
  %v87 = vadd.f32 %v59, %v83
  %v88 = vadd.f32 %v60, %v84
  %v89 = vadd.f32 %v61, %v85
  %v90 = vld [vmem:[%s2] sm:$0xff]
  %v91 = vld [vmem:[%s2 + $0x8] sm:$0xff]
  %v92 = vld [vmem:[%s2 + $0x10] sm:$0xff]
  %v93 = vld [vmem:[%s2 + $0x18] sm:$0xff]
  %95 = vset.pattern.permute.xlu0 0
  %96 = vperm.xlu0 %95, %v90
  %v97 = vpop.permute.xlu0 %96
  %100 = vset.pattern.permute.xlu0 0
  %101 = vperm.xlu0 %100, %v91
  %v102 = vpop.permute.xlu0 %101
  %105 = vset.pattern.permute.xlu0 0
  %106 = vperm.xlu0 %105, %v92
  %v107 = vpop.permute.xlu0 %106
  %110 = vset.pattern.permute.xlu0 0
  %111 = vperm.xlu0 %110, %v93
  %v112 = vpop.permute.xlu0 %111
  %v114 = vadd.f32 %v86, %v97
  %v115 = vadd.f32 %v87, %v102
  %v116 = vadd.f32 %v88, %v107
  %v117 = vadd.f32 %v89, %v112
  %v118 = vmax.f32 %v114, 0.0
  %v119 = vmax.f32 %v115, 0.0
  %v120 = vmax.f32 %v116, 0.0
  %v121 = vmax.f32 %v117, 0.0
  %v122 = vld [vmem:[%s3] sm:$0xff]
  %v123 = vld [vmem:[%s3 + $0x8] sm:$0xff]
  %v124 = vld [vmem:[%s3 + $0x10] sm:$0xff]
  %v125 = vld [vmem:[%s3 + $0x18] sm:$0xff]
  %v126 = vld [vmem:[%s4] sm:$0xff]
  %v127 = vld [vmem:[%s4 + $0x8] sm:$0xff]
  %v128 = vld [vmem:[%s4 + $0x10] sm:$0xff]
  %v129 = vld [vmem:[%s4 + $0x18] sm:$0xff]
  %131 = vset.pattern.permute.xlu0 0
  %132 = vperm.xlu0 %131, %v126
  %v133 = vpop.permute.xlu0 %132
  %136 = vset.pattern.permute.xlu0 0
  %137 = vperm.xlu0 %136, %v127
  %v138 = vpop.permute.xlu0 %137
  %141 = vset.pattern.permute.xlu0 0
  %142 = vperm.xlu0 %141, %v128
  %v143 = vpop.permute.xlu0 %142
  %146 = vset.pattern.permute.xlu0 0
  %147 = vperm.xlu0 %146, %v129
  %v148 = vpop.permute.xlu0 %147
  %vm150 = vcmask 261120
  %v152 = vsel %vm150, %v122, 0
  %v155 = vsel %vm150, %v123, 0
  %v158 = vsel %vm150, %v124, 0
  %v161 = vsel %vm150, %v125, 0
  %163 = vmatprep.subr.mxu0 0.0
  %164 = vmatpush1.msra.mxu0 %v118
  %165 = vmatprep.subr.mxu0 0.0
  %166 = vmatpush1.msra.mxu0 %v119
  %167 = vmatprep.subr.mxu0 0.0
  %168 = vmatpush1.msra.mxu0 %v120
  %169 = vmatprep.subr.mxu0 0.0
  %170 = vmatpush1.msra.mxu0 %v121
  %171 = vmatprep.subr.mxu0 0.0
  %172 = vmatpush1.msra.mxu0 0.0
  %173 = vmatprep.subr.mxu0 0.0
  %174 = vmatpush1.msra.mxu0 0.0
  %175 = vmatprep.subr.mxu0 0.0
  %176 = vmatpush1.msra.mxu0 0.0
  %177 = vmatprep.subr.mxu0 0.0
  %178 = vmatpush1.msra.mxu0 0.0
  %179 = vmatprep.subr.mxu0 0.0
  %180 = vmatpush1.msra.mxu0 0.0
  %181 = vmatprep.subr.mxu0 0.0
  %182 = vmatpush1.msra.mxu0 0.0
  %183 = vmatprep.subr.mxu0 0.0
  %184 = vmatpush1.msra.mxu0 0.0
  %185 = vmatprep.subr.mxu0 0.0
  %186 = vmatpush1.msra.mxu0 0.0
  %187 = vmatprep.subr.mxu0 0.0
  %188 = vmatpush1.msra.mxu0 0.0
  %189 = vmatprep.subr.mxu0 0.0
  %190 = vmatpush1.msra.mxu0 0.0
  %191 = vmatprep.subr.mxu0 0.0
  %192 = vmatpush1.msra.mxu0 0.0
  %193 = vmatprep.subr.mxu0 0.0
  %194 = vmatpush1.msra.mxu0 0.0
  %195 = vmatprep.subr.mxu0 0.0
  %196 = vmatpush1.msra.mxu0 0.0
  %197 = vmatprep.subr.mxu0 0.0
  %198 = vmatpush1.msra.mxu0 0.0
  %199 = vmatprep.subr.mxu0 0.0
  %200 = vmatpush1.msra.mxu0 0.0
  %201 = vmatprep.subr.mxu0 0.0
  %202 = vmatpush1.msra.mxu0 0.0
  %203 = vmatprep.subr.mxu0 0.0
  %204 = vmatpush1.msra.mxu0 0.0
  %205 = vmatprep.subr.mxu0 0.0
  %206 = vmatpush1.msra.mxu0 0.0
  %207 = vmatprep.subr.mxu0 0.0
  %208 = vmatpush1.msra.mxu0 0.0
  %209 = vmatprep.subr.mxu0 0.0
  %210 = vmatpush1.msra.mxu0 0.0
  %211 = vmatprep.subr.mxu0 0.0
  %212 = vmatpush1.msra.mxu0 0.0
  %213 = vmatprep.subr.mxu0 0.0
  %214 = vmatpush1.msra.mxu0 0.0
  %215 = vmatprep.subr.mxu0 0.0
  %216 = vmatpush1.msra.mxu0 0.0
  %217 = vmatprep.subr.mxu0 0.0
  %218 = vmatpush1.msra.mxu0 0.0
  %219 = vmatprep.subr.mxu0 0.0
  %220 = vmatpush1.msra.mxu0 0.0
  %221 = vmatprep.subr.mxu0 0.0
  %222 = vmatpush1.msra.mxu0 0.0
  %223 = vmatprep.subr.mxu0 0.0
  %224 = vmatpush1.msra.mxu0 0.0
  %225 = vmatprep.subr.mxu0 0.0
  %226 = vmatpush1.msra.mxu0 0.0
  %227 = vmatprep.mubr.f32.mxu0 0.0
  %228 = vmatmul.mubr.f32.gmra.mrb[0].mxu0 %v152
  %v229 = vpop.f32.mrb[0].mxu0
  %v230 = vadd.f32 %v133, %v229
  %v231 = vpop.f32.mrb[0].mxu0
  %232 = vmatprep.mubr.f32.mxu0 0.0
  %233 = vmatmul.mubr.f32.gmra.mrb[0].mxu0 %v155
  %v234 = vpop.f32.mrb[0].mxu0
  %v235 = vadd.f32 %v138, %v234
  %v236 = vpop.f32.mrb[0].mxu0
  %237 = vmatprep.mubr.f32.mxu0 0.0
  %238 = vmatmul.mubr.f32.gmra.mrb[0].mxu0 %v158
  %v239 = vpop.f32.mrb[0].mxu0
  %v240 = vadd.f32 %v143, %v239
  %v241 = vpop.f32.mrb[0].mxu0
  %242 = vmatprep.mubr.f32.mxu0 0.0
  %243 = vmatmul.mubr.f32.gmra.mrb[0].mxu0 %v161
  %v244 = vpop.f32.mrb[0].mxu0
  %v245 = vadd.f32 %v148, %v244
  %v246 = vpop.f32.mrb[0].mxu0
  %247 = vdwg.mxu0
  %v248 = vmax.f32 %v230, 0.0
  %v249 = vmax.f32 %v235, 0.0
  %v250 = vmax.f32 %v240, 0.0
  %v251 = vmax.f32 %v245, 0.0
  %v252 = vld [vmem:[%s5] sm:$0xff]
  %v253 = vld [vmem:[%s5 + $0x8] sm:$0xff]
  %v254 = vld [vmem:[%s5 + $0x10] sm:$0xff]
  %v255 = vld [vmem:[%s5 + $0x18] sm:$0xff]
  %257 = vset.pattern.permute.xlu0 0
  %258 = vperm.xlu0 %257, %v252
  %v259 = vpop.permute.xlu0 %258
  %262 = vset.pattern.permute.xlu0 0
  %263 = vperm.xlu0 %262, %v253
  %v264 = vpop.permute.xlu0 %263
  %267 = vset.pattern.permute.xlu0 0
  %268 = vperm.xlu0 %267, %v254
  %v269 = vpop.permute.xlu0 %268
  %272 = vset.pattern.permute.xlu0 0
  %273 = vperm.xlu0 %272, %v255
  %v274 = vpop.permute.xlu0 %273
  %v276 = vmul.f32 %v259, %v248
  %v277 = vmul.f32 %v264, %v249
  %v278 = vmul.f32 %v269, %v250
  %v279 = vmul.f32 %v274, %v251
  %v280 = vadd.f32 %v276, %v277
  %v281 = vadd.f32 %v280, %v278
  %v282 = vadd.f32 %v281, %v279
  %v283 = vrot.slane %v282, 4
  %v284 = vadd.f32 %v282, %v283
  %v285 = vrot.slane %v284, 2
  %v286 = vadd.f32 %v284, %v285
  %v287 = vrot.slane %v286, 1
  %v288 = vadd.f32 %v286, %v287
  %v289 = vld [vmem:[#allocation2] sm:$0x1]
  %291 = vset.pattern.permute.xlu0 0
  %292 = vperm.xlu0 %291, %v289
  %v293 = vpop.permute.xlu0 %292
  %v295 = vlaneseq
  %v296 = vshrl.u32 %v295, 7
  %v297 = vsub.s32 0, %v296
  %v298 = vrot.slane %v293, %v297
  %v299 = vadd.f32 %v288, %v298
  %v300 = vmul.f32 %v299, 0.25
  %v301 = vtanh.pop %v300
  %v302 = vadd.f32 %v301, 1.0
  %v303 = vmul.f32 %v302, 2.5
  %v304 = vsub.f32 %v303, 0.5
  %305 = vst [vmem:[%s7] sm:$0x1] %v304
  // Predicated region
  $region30: #{mlp_flux_2_value_forward.1} parent=0 // pred_check
    _
  $region31: #{mlp_flux_2_value_forward.1} parent=0 // pred_check_branch
    %307 = sbr.rel (0) target = $region33
  $region32: #{mlp_flux_2_value_forward.1} parent=0 // pred_region
    _
  $region33: #{mlp_flux_2_value_forward.1} parent=0 // pred_fallthru
    _
  // Predicated region
  $region34: #{mlp_flux_2_value_forward.1} parent=0 // pred_check
    _
  $region35: #{mlp_flux_2_value_forward.1} parent=0 // pred_check_branch
    %309 = sbr.rel (0) target = $region37
  $region36: #{mlp_flux_2_value_forward.1} parent=0 // pred_region
    _
  $region37: #{mlp_flux_2_value_forward.1} parent=0 // pred_fallthru
    _

</llo_original>
